<compile_context>
chip_gen: v7x
topology: tpu7x:2x2x1
jax: 0.10.0
libtpu: 0.0.40
codegen_flags: <defaults>
</compile_context>

<pallas_src>
import jax
import jax.numpy as jnp
from jax.experimental import pallas as pl
from jax.experimental.pallas import tpu as pltpu

_NEG_FILL = -1e30  # finite "minus infinity" for padded vocab lanes


def _round_up(x, m):
    return (x + m - 1) // m * m


# ---------------------------------------------------------------------------
# Kernel bodies
# ---------------------------------------------------------------------------

def _onehot_logits(ids, table_ref, v):
    """Row gather as one-hot(ids) @ table on the MXU (exact, f32 accumulate)."""
    tile_n = ids.shape[0]
    vocab_iota = jax.lax.broadcasted_iota(jnp.int32, (tile_n, v), 1)
    onehot = (vocab_iota == ids).astype(table_ref.dtype)
    logits = jnp.dot(onehot, table_ref[...], preferred_element_type=jnp.float32)
    return vocab_iota, logits


def _ce_tile_sum(vocab_iota, logits, tgt):
    """Sum of per-token cross entropy over the tile; padded rows (tgt<0) -> 0."""
    m = jnp.max(logits, axis=-1, keepdims=True)
    lse = m + jnp.log(jnp.sum(jnp.exp(logits - m), axis=-1, keepdims=True))
    tgt_logit = jnp.sum(jnp.where(vocab_iota == tgt, logits, 0.0),
                        axis=-1, keepdims=True)
    per_tok = jnp.where(tgt >= 0, lse - tgt_logit, 0.0)
    return jnp.sum(per_tok)  # f32 scalar


def _scalar_to_slab(x, shape):
    """Place scalar x at element [..., 0, 0] of a lane-dense (..., 8, 128) slab."""
    sub = jax.lax.broadcasted_iota(jnp.int32, shape, len(shape) - 2)
    lane = jax.lax.broadcasted_iota(jnp.int32, shape, len(shape) - 1)
    return jnp.where((sub == 0) & (lane == 0), x, 0.0)


def _bigram_logits_kernel(ids_ref, table_ref, logits_ref):
    # Inference path: logits only (no CE / EUP / XLU work).
    _, logits = _onehot_logits(ids_ref[...], table_ref, logits_ref.shape[1])
    logits_ref[...] = logits.astype(logits_ref.dtype)


def _bigram_logits_loss_kernel(ids_ref, tgt_ref, table_ref, logits_ref, psum_ref):
    vocab_iota, logits = _onehot_logits(ids_ref[...], table_ref,
                                        logits_ref.shape[1])
    logits_ref[...] = logits.astype(logits_ref.dtype)
    tile_sum = _ce_tile_sum(vocab_iota, logits, tgt_ref[...])
    psum_ref[...] = _scalar_to_slab(tile_sum, psum_ref.shape)


def _bigram_loss_only_kernel(ids_ref, tgt_ref, table_ref, psum_ref):
    # Training fast path: no logits writeback at all.
    vocab_iota, logits = _onehot_logits(ids_ref[...], table_ref,
                                        table_ref.shape[1])
    tile_sum = _ce_tile_sum(vocab_iota, logits, tgt_ref[...])
    psum_ref[...] = _scalar_to_slab(tile_sum, psum_ref.shape)


# ---------------------------------------------------------------------------
# Host-side helpers
# ---------------------------------------------------------------------------

def _vmem_cap_bytes():
    try:
        phys = int(pltpu.get_tpu_info().vmem_capacity_bytes)
    except Exception:
        phys = 64 << 20                      # assume the smallest if unknown
    if phys >= (96 << 20):
        return 100 << 20                     # v5e / v6e: 128 MiB physical VMEM
    return 48 << 20                          # v7x-like: 64 MiB per TensorCore


def _compiler_params(tile_n, v_pad, table_itemsize, logits_itemsize, *,
                     with_logits, with_loss, table_buffers):
    # (tile_n, 1) int32 blocks occupy a full 128-lane VMEM tile.
    est = 2 * tile_n * 128 * 4                               # ids, 2 buffers
    if with_loss:
        est += 2 * tile_n * 128 * 4                          # targets
        est += 2 * 8 * 128 * 4                               # partial-sum slab
    if with_logits:
        est += 2 * tile_n * v_pad * logits_itemsize          # logits out
    est += table_buffers * v_pad * v_pad * table_itemsize    # resident table
    vmem_limit = int(min(_round_up(3 * est + (4 << 20), 1 << 20),
                         _vmem_cap_bytes()))
    return pltpu.CompilerParams(
        dimension_semantics=("parallel",),
        vmem_limit_bytes=vmem_limit)


def _prepare(context, table, tile_n):
    B, T = context.shape
    V = table.shape[0]
    N = B * T

    V_pad = _round_up(V, 128)
    tile_n = min(tile_n, _round_up(N, 8))
    tile_n = _round_up(tile_n, 8)
    N_pad = _round_up(N, tile_n)

    # Pad the table: extra columns -> very negative (ignored by max/logsumexp),
    # extra rows -> 0 (never selected; one-hot weight there is exactly 0).
    if V_pad != V:
        table_p = jnp.full((V_pad, V_pad), _NEG_FILL, table.dtype)
        table_p = table_p.at[:V, :V].set(table)
        table_p = table_p.at[V:, :].set(jnp.zeros((), table.dtype))
    else:
        table_p = table

    ids = context.reshape(N).astype(jnp.int32)
    ids_p = jnp.pad(ids, (0, N_pad - N)).reshape(N_pad, 1)
    return ids_p, table_p, B, T, V, N, V_pad, N_pad, tile_n


def _pad_targets(targets, N, N_pad):
    tgt = targets.reshape(N).astype(jnp.int32)
    return jnp.pad(tgt, (0, N_pad - N), constant_values=-1).reshape(N_pad, 1)


def _check_table_fits(v_pad, itemsize, table_buffers):
    # TODO(synk): implement the scalar-prefetch DMA row-gather path for vocabs
    #             whose padded table exceeds the VMEM budget.
    budget = int(0.6 * _vmem_cap_bytes())
    if table_buffers * v_pad * v_pad * itemsize > budget:
        raise NotImplementedError(
            "vocab too large for the VMEM-resident one-hot-matmul path")


def _table_specs(v_pad):
    """Candidate BlockSpecs for the grid-invariant table, best first.

    Constant index_map => single-buffering (pl.Buffered(1)) halves the table's
    VMEM footprint; keep the default double-buffered spec as a fallback.
    """
    idx = lambda i: (0, 0)
    specs = []
    try:
        specs.append((pl.BlockSpec((v_pad, v_pad), idx,
                                   pipeline_mode=pl.Buffered(1)), 1))
    except Exception:
        pass
    specs.append((pl.BlockSpec((v_pad, v_pad), idx), 2))
    return specs


def _run_with_table(v_pad, build_and_run):
    specs = _table_specs(v_pad)
    for i, (spec, nbuf) in enumerate(specs):
        try:
            return build_and_run(spec, nbuf)
        except NotImplementedError:
            raise
        except Exception:
            if i == len(specs) - 1:
                raise


# ---------------------------------------------------------------------------
# Public wrappers
# ---------------------------------------------------------------------------

def bigram_forward(context, table, targets=None, *, tile_n=1024,
                   logits_dtype=jnp.float32, return_padded=False):
    """Pallas equivalent of BigramLanguageModel.forward.

    context: (B, T) int token ids
    table:   (V, V) float embedding table (f32 or bf16)
    targets: optional (B, T) int token ids
    tile_n:  token-axis tile (shrinks automatically for tiny inputs)
    logits_dtype: dtype of returned logits (bf16 halves the HBM writeback;
             cross-entropy is still computed in f32 inside the kernel)
    return_padded: skip the post-kernel [:N, :V] slice and return padded
             (N_pad, V_pad) logits for fused consumers
    returns: (logits, loss). logits is (B, T, V) when targets is None
             (matching the PyTorch module), else the flattened (B*T, V) view;
             loss is a scalar mean cross-entropy (or None).
    """
    ids_p, table_p, B, T, V, N, V_pad, N_pad, tile_n = _prepare(
        context, table, tile_n)
    grid = (N_pad // tile_n,)
    num_tiles = grid[0]
    t_item = jnp.dtype(table_p.dtype).itemsize
    l_item = jnp.dtype(logits_dtype).itemsize

    tok_spec = pl.BlockSpec((tile_n, 1), lambda i: (i, 0))
    logits_spec = pl.BlockSpec((tile_n, V_pad), lambda i: (i, 0))
    psum_spec = pl.BlockSpec((1, 8, 128), lambda i: (i, 0, 0))

    if targets is None:
        def run(table_spec, nbuf):
            _check_table_fits(V_pad, t_item, nbuf)
            return pl.pallas_call(
                _bigram_logits_kernel,
                out_shape=jax.ShapeDtypeStruct((N_pad, V_pad), logits_dtype),
                grid_spec=pltpu.PrefetchScalarGridSpec(
                    num_scalar_prefetch=0, grid=grid,
                    in_specs=[tok_spec, table_spec],
                    out_specs=logits_spec),
                compiler_params=_compiler_params(
                    tile_n, V_pad, t_item, l_item,
                    with_logits=True, with_loss=False, table_buffers=nbuf),
            )(ids_p, table_p)

        logits_flat = _run_with_table(V_pad, run)
        if return_padded:
            return logits_flat, None
        if V_pad != V or N_pad != N:
            logits_flat = logits_flat[:N, :V]
        return logits_flat.reshape(B, T, V), None

    tgt_p = _pad_targets(targets, N, N_pad)

    def run(table_spec, nbuf):
        _check_table_fits(V_pad, t_item, nbuf)
        return pl.pallas_call(
            _bigram_logits_loss_kernel,
            out_shape=(jax.ShapeDtypeStruct((N_pad, V_pad), logits_dtype),
                       jax.ShapeDtypeStruct((num_tiles, 8, 128), jnp.float32)),
            grid_spec=pltpu.PrefetchScalarGridSpec(
                num_scalar_prefetch=0, grid=grid,
                in_specs=[tok_spec, tok_spec, table_spec],
                out_specs=(logits_spec, psum_spec)),
            compiler_params=_compiler_params(
                tile_n, V_pad, t_item, l_item,
                with_logits=True, with_loss=True, table_buffers=nbuf),
        )(ids_p, tgt_p, table_p)

    logits_flat, psum = _run_with_table(V_pad, run)
    loss = jnp.sum(psum) / jnp.float32(N)
    if return_padded:
        return logits_flat, loss
    if V_pad != V or N_pad != N:
        logits_flat = logits_flat[:N, :V]
    return logits_flat, loss


def bigram_loss(context, table, targets, *, tile_n=1024):
    """Loss-only fast path: skips the (N, V) logits HBM writeback entirely."""
    ids_p, table_p, B, T, V, N, V_pad, N_pad, tile_n = _prepare(
        context, table, tile_n)
    grid = (N_pad // tile_n,)
    num_tiles = grid[0]
    t_item = jnp.dtype(table_p.dtype).itemsize
    tgt_p = _pad_targets(targets, N, N_pad)

    tok_spec = pl.BlockSpec((tile_n, 1), lambda i: (i, 0))
    psum_spec = pl.BlockSpec((1, 8, 128), lambda i: (i, 0, 0))

    def run(table_spec, nbuf):
        _check_table_fits(V_pad, t_item, nbuf)
        return pl.pallas_call(
            _bigram_loss_only_kernel,
            out_shape=jax.ShapeDtypeStruct((num_tiles, 8, 128), jnp.float32),
            grid_spec=pltpu.PrefetchScalarGridSpec(
                num_scalar_prefetch=0, grid=grid,
                in_specs=[tok_spec, tok_spec, table_spec],
                out_specs=psum_spec),
            compiler_params=_compiler_params(
                tile_n, V_pad, t_item, 4,
                with_logits=False, with_loss=True, table_buffers=nbuf),
        )(ids_p, tgt_p, table_p)

    psum = _run_with_table(V_pad, run)
    return jnp.sum(psum) / jnp.float32(N)


# ---------------------------------------------------------------------------
# Self-test
# ---------------------------------------------------------------------------

if __name__ == "__main__":
    key = jax.random.PRNGKey(0)
    k_tab, k_ctx, k_tgt, k_ctx2, k_tgt2 = jax.random.split(key, 5)

    vocab_size = 65        # typical char-level vocab; exercises lane padding
    B, T = 2, 8

    # nn.Embedding default init: N(0, 1)
    table = jax.random.normal(k_tab, (vocab_size, vocab_size), jnp.float32)
    context = jax.random.randint(k_ctx, (B, T), 0, vocab_size, jnp.int32)
    targets = jax.random.randint(k_tgt, (B, T), 0, vocab_size, jnp.int32)

    def ref_forward(ctx, tab, tgt=None):
        lg = tab[ctx.reshape(-1)]
        if tgt is None:
            return lg, None
        lse = jax.scipy.special.logsumexp(lg, axis=-1)
        n = lg.shape[0]
        loss = jnp.mean(lse - lg[jnp.arange(n), tgt.reshape(-1)])
        return lg, loss

    # 1. Training path: logits + cross-entropy loss (f32, exact vs reference).
    logits, loss = bigram_forward(context, table, targets)
    jax.block_until_ready((logits, loss))
    ref_logits, ref_loss = ref_forward(context, table, targets)
    assert logits.shape == (B * T, vocab_size)
    assert jnp.allclose(logits, ref_logits, atol=1e-5)
    assert jnp.allclose(loss, ref_loss, atol=1e-5)

    # 2. Inference path: logits only, (B, T, V) like the PyTorch module.
    logits_inf, loss_none = bigram_forward(context, table, None)
    jax.block_until_ready(logits_inf)
    assert loss_none is None
    assert logits_inf.shape == (B, T, vocab_size)
    assert jnp.allclose(logits_inf.reshape(B * T, vocab_size), ref_logits,
                        atol=1e-5)

    # 3. Loss-only fast path (no logits writeback).
    loss_fast = bigram_loss(context, table, targets)
    jax.block_until_ready(loss_fast)
    assert jnp.allclose(loss_fast, ref_loss, atol=1e-5)

    # 4. Multi-tile grid + padded token rows + bf16 fast logits output.
    B2, T2 = 2, 520   # N = 1040 > tile_n -> 2 grid steps, 1008 padded rows
    ctx2 = jax.random.randint(k_ctx2, (B2, T2), 0, vocab_size, jnp.int32)
    tgt2 = jax.random.randint(k_tgt2, (B2, T2), 0, vocab_size, jnp.int32)
    logits2, loss2 = bigram_forward(ctx2, table, tgt2,
                                    logits_dtype=jnp.bfloat16)
    jax.block_until_ready((logits2, loss2))
    ref_logits2, ref_loss2 = ref_forward(ctx2, table, tgt2)
    assert logits2.dtype == jnp.bfloat16
    assert logits2.shape == (B2 * T2, vocab_size)
    assert jnp.allclose(logits2.astype(jnp.float32), ref_logits2, atol=5e-2)
    assert jnp.allclose(loss2, ref_loss2, atol=1e-4)   # CE still f32 in-kernel

    print("KERNEL_OK")
</pallas_src>

<mosaic_0001>
module attributes {stable_mosaic.version = 11 : i64} {
  func.func @_bigram_logits_loss_kernel(%arg0: i32, %arg1: memref<16x1xi32, #tpu.memory_space<vmem>>, %arg2: memref<16x1xi32, #tpu.memory_space<vmem>>, %arg3: memref<128x128xf32, #tpu.memory_space<vmem>>, %arg4: memref<16x128xf32, #tpu.memory_space<vmem>>, %arg5: memref<1x8x128xf32, #tpu.memory_space<vmem>>) attributes {dimension_semantics = [#tpu.dimension_semantics<parallel>], iteration_bounds = array<i64: 1>, scalar_prefetch = 0 : i64, scratch_operands = 0 : i64, tpu.core_type = #tpu.core_type<tc>, window_params = [{transform_indices = @transform_0, window_bounds = array<i64: 16, 1>}, {transform_indices = @transform_1, window_bounds = array<i64: 16, 1>}, {pipeline_mode = #tpu.pipeline_mode<synchronous>, transform_indices = @transform_2, window_bounds = array<i64: 128, 128>}, {transform_indices = @transform_3, window_bounds = array<i64: 16, 128>}, {transform_indices = @transform_4, window_bounds = array<i64: 1, 8, 128>}]} {
    %c0 = arith.constant 0 : index
    %c0_0 = arith.constant 0 : index
    %0 = vector.load %arg1[%c0, %c0_0] : memref<16x1xi32, #tpu.memory_space<vmem>>, vector<16x1xi32>
    %1 = tpu.iota {dimensions = array<i32: 1>} : vector<16x128xi32>
    %2 = vector.broadcast %0 : vector<16x1xi32> to vector<16x128xi32>
    %3 = arith.cmpi eq, %1, %2 : vector<16x128xi32>
    %4 = arith.extui %3 : vector<16x128xi1> to vector<16x128xi32>
    %5 = arith.sitofp %4 : vector<16x128xi32> to vector<16x128xf32>
    %c0_1 = arith.constant 0 : index
    %c0_2 = arith.constant 0 : index
    %6 = vector.load %arg3[%c0_1, %c0_2] : memref<128x128xf32, #tpu.memory_space<vmem>>, vector<128x128xf32>
    %cst = arith.constant dense<0.000000e+00> : vector<16x128xf32>
    %7 = tpu.matmul %5, %6, %cst {dimension_numbers = #tpu.dot_dimension_numbers<[1], [0], [0], [1], [0, 0, 1, 1], [], []>} : vector<16x128xf32>, vector<128x128xf32>, vector<16x128xf32> -> vector<16x128xf32>
    %c0_3 = arith.constant 0 : index
    %c0_4 = arith.constant 0 : index
    %8 = vector.load %arg4[%c0_3, %c0_4] : memref<16x128xf32, #tpu.memory_space<vmem>>, vector<16x128xf32>
    tpu.vector_store %arg4[%c0_3, %c0_4], %7 {strides = array<i32>} : memref<16x128xf32, #tpu.memory_space<vmem>>, vector<16x128xf32>,
    %c0_5 = arith.constant 0 : index
    %c0_6 = arith.constant 0 : index
    %9 = vector.load %arg2[%c0_5, %c0_6] : memref<16x1xi32, #tpu.memory_space<vmem>>, vector<16x1xi32>
    %cst_7 = arith.constant dense<0xFF800000> : vector<16xf32>
    %10 = vector.multi_reduction <maximumf>, %7, %cst_7 [1] : vector<16x128xf32> to vector<16xf32>
    %11 = vector.shape_cast %10 : vector<16xf32> to vector<16x1xf32>
    %12 = vector.broadcast %11 : vector<16x1xf32> to vector<16x128xf32>
    %13 = arith.subf %7, %12 : vector<16x128xf32>
    %14 = math.exp %13 : vector<16x128xf32>
    %cst_8 = arith.constant dense<0.000000e+00> : vector<16xf32>
    %15 = vector.multi_reduction <add>, %14, %cst_8 [1] : vector<16x128xf32> to vector<16xf32>
    %16 = vector.shape_cast %15 : vector<16xf32> to vector<16x1xf32>
    %17 = math.log %16 : vector<16x1xf32>
    %18 = arith.addf %11, %17 : vector<16x1xf32>
    %19 = vector.broadcast %9 : vector<16x1xi32> to vector<16x128xi32>
    %20 = arith.cmpi eq, %1, %19 : vector<16x128xi32>
    %cst_9 = arith.constant 0.000000e+00 : f32
    %21 = vector.broadcast %cst_9 : f32 to vector<16x128xf32>
    %22 = arith.select %20, %7, %21 : vector<16x128xi1>, vector<16x128xf32>
    %cst_10 = arith.constant dense<0.000000e+00> : vector<16xf32>
    %23 = vector.multi_reduction <add>, %22, %cst_10 [1] : vector<16x128xf32> to vector<16xf32>
    %24 = vector.shape_cast %23 : vector<16xf32> to vector<16x1xf32>
    %c0_i32 = arith.constant 0 : i32
    %25 = vector.broadcast %c0_i32 : i32 to vector<16x1xi32>
    %26 = arith.cmpi sge, %9, %25 : vector<16x1xi32>
    %27 = arith.subf %18, %24 : vector<16x1xf32>
    %cst_11 = arith.constant 0.000000e+00 : f32
    %28 = vector.broadcast %cst_11 : f32 to vector<16x1xf32>
    %29 = arith.select %26, %27, %28 : vector<16x1xi1>, vector<16x1xf32>
    %30 = vector.shape_cast %29 : vector<16x1xf32> to vector<1x16x1xf32>
    %cst_12 = arith.constant dense<0.000000e+00> : vector<1xf32>
    %31 = vector.multi_reduction <add>, %30, %cst_12 [1, 2] : vector<1x16x1xf32> to vector<1xf32>
    %32 = vector.shape_cast %31 : vector<1xf32> to vector<1x1x1xf32>
    %33 = vector.extract %32[0, 0, 0] : f32 from vector<1x1x1xf32>
    %34 = tpu.iota {dimensions = array<i32: 1>} : vector<1x8x128xi32>
    %35 = tpu.iota {dimensions = array<i32: 2>} : vector<1x8x128xi32>
    %c0_i32_13 = arith.constant 0 : i32
    %36 = vector.broadcast %c0_i32_13 : i32 to vector<1x8x128xi32>
    %37 = arith.cmpi eq, %34, %36 : vector<1x8x128xi32>
    %c0_i32_14 = arith.constant 0 : i32
    %38 = vector.broadcast %c0_i32_14 : i32 to vector<1x8x128xi32>
    %39 = arith.cmpi eq, %35, %38 : vector<1x8x128xi32>
    %40 = arith.andi %37, %39 : vector<1x8x128xi1>
    %cst_15 = arith.constant 0.000000e+00 : f32
    %41 = vector.broadcast %33 : f32 to vector<1x8x128xf32>
    %42 = vector.broadcast %cst_15 : f32 to vector<1x8x128xf32>
    %43 = arith.select %40, %41, %42 : vector<1x8x128xi1>, vector<1x8x128xf32>
    %c0_16 = arith.constant 0 : index
    %c0_17 = arith.constant 0 : index
    %c0_18 = arith.constant 0 : index
    %44 = vector.load %arg5[%c0_16, %c0_17, %c0_18] : memref<1x8x128xf32, #tpu.memory_space<vmem>>, vector<1x8x128xf32>
    tpu.vector_store %arg5[%c0_16, %c0_17, %c0_18], %43 {strides = array<i32>} : memref<1x8x128xf32, #tpu.memory_space<vmem>>, vector<1x8x128xf32>,
    return
  }
  func.func @transform_0(%arg0: i32) -> (i32, i32) {
    %c0_i32 = arith.constant 0 : i32
    %c0_i32_0 = arith.constant 0 : i32
    return %arg0, %c0_i32 : i32, i32
  }
  func.func @transform_1(%arg0: i32) -> (i32, i32) {
    %c0_i32 = arith.constant 0 : i32
    %c0_i32_0 = arith.constant 0 : i32
    return %arg0, %c0_i32 : i32, i32
  }
  func.func @transform_2(%arg0: i32) -> (i32, i32) {
    %c0_i32 = arith.constant 0 : i32
    %c0_i32_0 = arith.constant 0 : i32
    %c0_i32_1 = arith.constant 0 : i32
    return %c0_i32, %c0_i32_0 : i32, i32
  }
  func.func @transform_3(%arg0: i32) -> (i32, i32) {
    %c0_i32 = arith.constant 0 : i32
    %c0_i32_0 = arith.constant 0 : i32
    return %arg0, %c0_i32 : i32, i32
  }
  func.func @transform_4(%arg0: i32) -> (i32, i32, i32) {
    %c0_i32 = arith.constant 0 : i32
    %c0_i32_0 = arith.constant 0 : i32
    %c0_i32_1 = arith.constant 0 : i32
    return %arg0, %c0_i32, %c0_i32_0 : i32, i32, i32
  }
}

module attributes {stable_mosaic.version = 11 : i64} {
  func.func @_bigram_logits_loss_kernel(%arg0: i32, %arg1: memref<16x1xi32, #tpu.memory_space<vmem>>, %arg2: memref<16x1xi32, #tpu.memory_space<vmem>>, %arg3: memref<128x128xf32, #tpu.memory_space<vmem>>, %arg4: memref<16x128xf32, #tpu.memory_space<vmem>>, %arg5: memref<1x8x128xf32, #tpu.memory_space<vmem>>) attributes {dimension_semantics = [#tpu.dimension_semantics<parallel>], iteration_bounds = array<i64: 1>, scalar_prefetch = 0 : i64, scratch_operands = 0 : i64, tpu.core_type = #tpu.core_type<tc>, window_params = [{transform_indices = @transform_0, window_bounds = array<i64: 16, 1>}, {transform_indices = @transform_1, window_bounds = array<i64: 16, 1>}, {pipeline_mode = #tpu.pipeline_mode<synchronous>, transform_indices = @transform_2, window_bounds = array<i64: 128, 128>}, {transform_indices = @transform_3, window_bounds = array<i64: 16, 128>}, {transform_indices = @transform_4, window_bounds = array<i64: 1, 8, 128>}]} {
    %c0 = arith.constant 0 : index
    %c0_0 = arith.constant 0 : index
    %0 = vector.load %arg1[%c0, %c0_0] : memref<16x1xi32, #tpu.memory_space<vmem>>, vector<16x1xi32>
    %1 = tpu.iota {dimensions = array<i32: 1>} : vector<16x128xi32>
    %2 = vector.broadcast %0 : vector<16x1xi32> to vector<16x128xi32>
    %3 = arith.cmpi eq, %1, %2 : vector<16x128xi32>
    %4 = arith.extui %3 : vector<16x128xi1> to vector<16x128xi32>
    %5 = arith.sitofp %4 : vector<16x128xi32> to vector<16x128xf32>
    %c0_1 = arith.constant 0 : index
    %c0_2 = arith.constant 0 : index
    %6 = vector.load %arg3[%c0_1, %c0_2] : memref<128x128xf32, #tpu.memory_space<vmem>>, vector<128x128xf32>
    %cst = arith.constant dense<0.000000e+00> : vector<16x128xf32>
    %7 = tpu.matmul %5, %6, %cst {dimension_numbers = #tpu.dot_dimension_numbers<[1], [0], [0], [1], [0, 0, 1, 1], [], []>} : vector<16x128xf32>, vector<128x128xf32>, vector<16x128xf32> -> vector<16x128xf32>
    %c0_3 = arith.constant 0 : index
    %c0_4 = arith.constant 0 : index
    %8 = vector.load %arg4[%c0_3, %c0_4] : memref<16x128xf32, #tpu.memory_space<vmem>>, vector<16x128xf32>
    tpu.vector_store %arg4[%c0_3, %c0_4], %7 {strides = array<i32>} : memref<16x128xf32, #tpu.memory_space<vmem>>, vector<16x128xf32>,
    %c0_5 = arith.constant 0 : index
    %c0_6 = arith.constant 0 : index
    %9 = vector.load %arg2[%c0_5, %c0_6] : memref<16x1xi32, #tpu.memory_space<vmem>>, vector<16x1xi32>
    %cst_7 = arith.constant dense<0xFF800000> : vector<16xf32>
    %10 = vector.multi_reduction <maximumf>, %7, %cst_7 [1] : vector<16x128xf32> to vector<16xf32>
    %11 = vector.shape_cast %10 : vector<16xf32> to vector<16x1xf32>
    %12 = vector.broadcast %11 : vector<16x1xf32> to vector<16x128xf32>
    %13 = arith.subf %7, %12 : vector<16x128xf32>
    %14 = math.exp %13 : vector<16x128xf32>
    %cst_8 = arith.constant dense<0.000000e+00> : vector<16xf32>
    %15 = vector.multi_reduction <add>, %14, %cst_8 [1] : vector<16x128xf32> to vector<16xf32>
    %16 = vector.shape_cast %15 : vector<16xf32> to vector<16x1xf32>
    %17 = math.log %16 : vector<16x1xf32>
    %18 = arith.addf %11, %17 : vector<16x1xf32>
    %19 = vector.broadcast %9 : vector<16x1xi32> to vector<16x128xi32>
    %20 = arith.cmpi eq, %1, %19 : vector<16x128xi32>
    %cst_9 = arith.constant 0.000000e+00 : f32
    %21 = vector.broadcast %cst_9 : f32 to vector<16x128xf32>
    %22 = arith.select %20, %7, %21 : vector<16x128xi1>, vector<16x128xf32>
    %cst_10 = arith.constant dense<0.000000e+00> : vector<16xf32>
    %23 = vector.multi_reduction <add>, %22, %cst_10 [1] : vector<16x128xf32> to vector<16xf32>
    %24 = vector.shape_cast %23 : vector<16xf32> to vector<16x1xf32>
    %c0_i32 = arith.constant 0 : i32
    %25 = vector.broadcast %c0_i32 : i32 to vector<16x1xi32>
    %26 = arith.cmpi sge, %9, %25 : vector<16x1xi32>
    %27 = arith.subf %18, %24 : vector<16x1xf32>
    %cst_11 = arith.constant 0.000000e+00 : f32
    %28 = vector.broadcast %cst_11 : f32 to vector<16x1xf32>
    %29 = arith.select %26, %27, %28 : vector<16x1xi1>, vector<16x1xf32>
    %30 = vector.shape_cast %29 : vector<16x1xf32> to vector<1x16x1xf32>
    %cst_12 = arith.constant dense<0.000000e+00> : vector<1xf32>
    %31 = vector.multi_reduction <add>, %30, %cst_12 [1, 2] : vector<1x16x1xf32> to vector<1xf32>
    %32 = vector.shape_cast %31 : vector<1xf32> to vector<1x1x1xf32>
    %33 = vector.extract %32[0, 0, 0] : f32 from vector<1x1x1xf32>
    %34 = tpu.iota {dimensions = array<i32: 1>} : vector<1x8x128xi32>
    %35 = tpu.iota {dimensions = array<i32: 2>} : vector<1x8x128xi32>
    %c0_i32_13 = arith.constant 0 : i32
    %36 = vector.broadcast %c0_i32_13 : i32 to vector<1x8x128xi32>
    %37 = arith.cmpi eq, %34, %36 : vector<1x8x128xi32>
    %c0_i32_14 = arith.constant 0 : i32
    %38 = vector.broadcast %c0_i32_14 : i32 to vector<1x8x128xi32>
    %39 = arith.cmpi eq, %35, %38 : vector<1x8x128xi32>
    %40 = arith.andi %37, %39 : vector<1x8x128xi1>
    %cst_15 = arith.constant 0.000000e+00 : f32
    %41 = vector.broadcast %33 : f32 to vector<1x8x128xf32>
    %42 = vector.broadcast %cst_15 : f32 to vector<1x8x128xf32>
    %43 = arith.select %40, %41, %42 : vector<1x8x128xi1>, vector<1x8x128xf32>
    %c0_16 = arith.constant 0 : index
    %c0_17 = arith.constant 0 : index
    %c0_18 = arith.constant 0 : index
    %44 = vector.load %arg5[%c0_16, %c0_17, %c0_18] : memref<1x8x128xf32, #tpu.memory_space<vmem>>, vector<1x8x128xf32>
    tpu.vector_store %arg5[%c0_16, %c0_17, %c0_18], %43 {strides = array<i32>} : memref<1x8x128xf32, #tpu.memory_space<vmem>>, vector<1x8x128xf32>,
    return
  }
  func.func @transform_0(%arg0: i32) -> (i32, i32) {
    %c0_i32 = arith.constant 0 : i32
    %c0_i32_0 = arith.constant 0 : i32
    return %arg0, %c0_i32 : i32, i32
  }
  func.func @transform_1(%arg0: i32) -> (i32, i32) {
    %c0_i32 = arith.constant 0 : i32
    %c0_i32_0 = arith.constant 0 : i32
    return %arg0, %c0_i32 : i32, i32
  }
  func.func @transform_2(%arg0: i32) -> (i32, i32) {
    %c0_i32 = arith.constant 0 : i32
    %c0_i32_0 = arith.constant 0 : i32
    %c0_i32_1 = arith.constant 0 : i32
    return %c0_i32, %c0_i32_0 : i32, i32
  }
  func.func @transform_3(%arg0: i32) -> (i32, i32) {
    %c0_i32 = arith.constant 0 : i32
    %c0_i32_0 = arith.constant 0 : i32
    return %arg0, %c0_i32 : i32, i32
  }
  func.func @transform_4(%arg0: i32) -> (i32, i32, i32) {
    %c0_i32 = arith.constant 0 : i32
    %c0_i32_0 = arith.constant 0 : i32
    %c0_i32_1 = arith.constant 0 : i32
    return %arg0, %c0_i32, %c0_i32_0 : i32, i32, i32
  }
}

</mosaic_0001>

<llo_original>
// kernel: tpu_custom_call.1
$region0: #{tpu_custom_call.1}
  #allocation0 [shape = 'u32[]', space=smem, size = 0x4, offset = 0x4, fixed_abs, tag = 'smem constant byte address 0x4 - core index']
  #allocation1 [shape = 'u32[144,128]{1,0:T(1,128)}', space=vmem, size = 0x12000, scoped, tag = 'internal scratch']
  %s0 = inlined_call_operand.vmem [shape: s32[16,1], index: 0, kind: input, shape index: {}]
  %s1 = inlined_call_operand.vmem [shape: s32[16,1], index: 1, kind: input, shape index: {}]
  %s2 = inlined_call_operand.hbm [shape: f32[128,128], index: 2, kind: input, shape index: {}]
  %s3 = inlined_call_operand.hbm [shape: f32[16,128], index: 3, kind: output, shape index: {0}]
  %s4 = inlined_call_operand.hbm [shape: f32[1,8,128], index: 4, kind: output, shape index: {1}]
  %5 = xla_tuple %s3, %s4
  %s6 = sld [smem:[#allocation0]]
  $region34: #{tpu_custom_call.1} parent=0
    _
  %s8 = ssub.s32 1, %s6
  %s9 = scalar_select 0, %s8, %s6
  $region1: #{tpu_custom_call.1} parent=0
    #allocation2 [shape = 'u8[65536]{0}', space=vmem, size = 0x10000, scoped, tag = 'input window, operand 2, single buffered']
    #allocation3 [shape = 's32[1]{0}', space=sflag, size = 0x4, scoped, tag = 'scoped memory for tpu_custom_call.1']
    #allocation4 [shape = 's32[1]{0}', space=sflag, size = 0x4, scoped, tag = 'scoped memory for tpu_custom_call.1']
    #allocation5 [shape = 'u8[8192]{0}', space=vmem, size = 0x2000, scoped, tag = 'output window, operand 0, single buffered']
    #allocation6 [shape = 'u8[4096]{0}', space=vmem, size = 0x1000, scoped, tag = 'output window, operand 1, single buffered']
    #allocation7 [shape = 's32[1]{0}', space=sflag, size = 0x4, scoped, tag = 'scoped memory for tpu_custom_call.1']
    %10 = vsyncpa [#allocation3], 0
    %11 = vsyncpa [#allocation4], 0
    %12 = vsyncpa [#allocation7], 0
    // Predicated region
    $region2: #{tpu_custom_call.1} parent=1 // pred_check
      _
    $region3: #{tpu_custom_call.1} parent=1 // pred_check_branch
      %14 = sbr.rel (0) target = $region5
    $region4: #{tpu_custom_call.1} parent=1 // pred_region
      _
    $region5: #{tpu_custom_call.1} parent=1 // pred_fallthru
      _
    // Predicated region
    $region6: #{tpu_custom_call.1} parent=1 // pred_check
      _
    $region7: #{tpu_custom_call.1} parent=1 // pred_check_branch
      %16 = sbr.rel (0) target = $region9
    $region8: #{tpu_custom_call.1} parent=1 // pred_region
      _
    $region9: #{tpu_custom_call.1} parent=1 // pred_fallthru
      _
    // Predicated region
    $region10: #{tpu_custom_call.1} parent=1 // pred_check
      _
    $region11: #{tpu_custom_call.1} parent=1 // pred_check_branch
      %18 = sbr.rel (0) target = $region13
    $region12: #{tpu_custom_call.1} parent=1 // pred_region
      %s20 = ssub.s32 2048, 2048
      %21 = vsyncadd [#allocation3], %s20
      %s22 = sshll.u32 [#allocation2], 4
      %s23 = int_to_ptr.vmem [resolvable:$true] %s22
      %28 = dma.hbm_to_vmem [thread:$0]  %s2, 2048, %s23, [#allocation3], 128, 128, 8
    $region13: #{tpu_custom_call.1} parent=1 // pred_fallthru
      _
    // Predicated region
    $region14: #{tpu_custom_call.1} parent=1 // pred_check
      _
    $region15: #{tpu_custom_call.1} parent=1 // pred_check_branch
      %30 = sbr.rel (0) target = $region17
    $region16: #{tpu_custom_call.1} parent=1 // pred_region
      %31 = dma.done [#allocation3], 2048
    $region17: #{tpu_custom_call.1} parent=1 // pred_fallthru
      _
    %v32 = vld [vmem:[%s0] sm:$0xff]
    %v33 = vld [vmem:[%s0 + $0x8] sm:$0xff]
    %v34 = vlaneseq
    %v35 = vand.u32 %v34, 127
    %36 = vset.pattern.permute.xlu0 0
    %37 = vperm.xlu0 %36, %v32
    %v38 = vpop.permute.xlu0 %37
    %39 = vset.pattern.permute.xlu0 0
    %40 = vperm.xlu0 %39, %v33
    %v41 = vpop.permute.xlu0 %40
    %vm42 = vcmp.eq.s32.totalorder %v35, %v38
    %vm43 = vcmp.eq.s32.totalorder %v35, %v41
    %v44 = vsel %vm42, 1, 0
    %v45 = vsel %vm43, 1, 0
    %v46 = vcvt.s32.f32 %v44
    %v47 = vcvt.s32.f32 %v45
    %v48 = vld [vmem:[#allocation2] sm:$0xff]
    %v49 = vld [vmem:[#allocation2 + $0x8] sm:$0xff]
    %v50 = vld [vmem:[#allocation2 + $0x10] sm:$0xff]
    %v51 = vld [vmem:[#allocation2 + $0x18] sm:$0xff]
    %v52 = vld [vmem:[#allocation2 + $0x20] sm:$0xff]
    %v53 = vld [vmem:[#allocation2 + $0x28] sm:$0xff]
    %v54 = vld [vmem:[#allocation2 + $0x30] sm:$0xff]
    %v55 = vld [vmem:[#allocation2 + $0x38] sm:$0xff]
    %v56 = vld [vmem:[#allocation2 + $0x40] sm:$0xff]
    %v57 = vld [vmem:[#allocation2 + $0x48] sm:$0xff]
    %v58 = vld [vmem:[#allocation2 + $0x50] sm:$0xff]
    %v59 = vld [vmem:[#allocation2 + $0x58] sm:$0xff]
    %v60 = vld [vmem:[#allocation2 + $0x60] sm:$0xff]
    %v61 = vld [vmem:[#allocation2 + $0x68] sm:$0xff]
    %v62 = vld [vmem:[#allocation2 + $0x70] sm:$0xff]
    %v63 = vld [vmem:[#allocation2 + $0x78] sm:$0xff]
    %64 = vmatprep.subr.mxu0 0.0
    %65 = vmatpush1.msra.mxu0 %v48
    %66 = vmatprep.subr.mxu0 0.0
    %67 = vmatpush1.msra.mxu0 %v49
    %68 = vmatprep.subr.mxu0 0.0
    %69 = vmatpush1.msra.mxu0 %v50
    %70 = vmatprep.subr.mxu0 0.0
    %71 = vmatpush1.msra.mxu0 %v51
    %72 = vmatprep.subr.mxu0 0.0
    %73 = vmatpush1.msra.mxu0 %v52
    %74 = vmatprep.subr.mxu0 0.0
    %75 = vmatpush1.msra.mxu0 %v53
    %76 = vmatprep.subr.mxu0 0.0
    %77 = vmatpush1.msra.mxu0 %v54
    %78 = vmatprep.subr.mxu0 0.0
    %79 = vmatpush1.msra.mxu0 %v55
    %80 = vmatprep.subr.mxu0 0.0
    %81 = vmatpush1.msra.mxu0 %v56
    %82 = vmatprep.subr.mxu0 0.0
    %83 = vmatpush1.msra.mxu0 %v57
    %84 = vmatprep.subr.mxu0 0.0
    %85 = vmatpush1.msra.mxu0 %v58
    %86 = vmatprep.subr.mxu0 0.0
    %87 = vmatpush1.msra.mxu0 %v59
    %88 = vmatprep.subr.mxu0 0.0
    %89 = vmatpush1.msra.mxu0 %v60
    %90 = vmatprep.subr.mxu0 0.0
    %91 = vmatpush1.msra.mxu0 %v61
    %92 = vmatprep.subr.mxu0 0.0
    %93 = vmatpush1.msra.mxu0 %v62
    %94 = vmatprep.subr.mxu0 0.0
    %95 = vmatpush1.msra.mxu0 %v63
    %96 = vmatprep.subr.mxu0 0.0
    %97 = vmatpush1.msra.mxu0 0.0
    %98 = vmatprep.subr.mxu0 0.0
    %99 = vmatpush1.msra.mxu0 0.0
    %100 = vmatprep.subr.mxu0 0.0
    %101 = vmatpush1.msra.mxu0 0.0
    %102 = vmatprep.subr.mxu0 0.0
    %103 = vmatpush1.msra.mxu0 0.0
    %104 = vmatprep.subr.mxu0 0.0
    %105 = vmatpush1.msra.mxu0 0.0
    %106 = vmatprep.subr.mxu0 0.0
    %107 = vmatpush1.msra.mxu0 0.0
    %108 = vmatprep.subr.mxu0 0.0
    %109 = vmatpush1.msra.mxu0 0.0
    %110 = vmatprep.subr.mxu0 0.0
    %111 = vmatpush1.msra.mxu0 0.0
    %112 = vmatprep.subr.mxu0 0.0
    %113 = vmatpush1.msra.mxu0 0.0
    %114 = vmatprep.subr.mxu0 0.0
    %115 = vmatpush1.msra.mxu0 0.0
    %116 = vmatprep.subr.mxu0 0.0
    %117 = vmatpush1.msra.mxu0 0.0
    %118 = vmatprep.subr.mxu0 0.0
    %119 = vmatpush1.msra.mxu0 0.0
    %120 = vmatprep.subr.mxu0 0.0
    %121 = vmatpush1.msra.mxu0 0.0
    %122 = vmatprep.subr.mxu0 0.0
    %123 = vmatpush1.msra.mxu0 0.0
    %124 = vmatprep.subr.mxu0 0.0
    %125 = vmatpush1.msra.mxu0 0.0
    %126 = vmatprep.subr.mxu0 0.0
    %127 = vmatpush1.msra.mxu0 0.0
    %128 = vmatprep.mubr.f32.mxu0 0.0
    %129 = vmatmul.mubr.f32.gmra.mrb[0].mxu0 %v46
    %v130 = vpop.f32.mrb[0].mxu0
    %v131 = vadd.f32 0.0, %v130
    %v132 = vpop.f32.mrb[0].mxu0
    %133 = vmatprep.mubr.f32.mxu0 0.0
    %134 = vmatmul.mubr.f32.gmra.mrb[0].mxu0 %v47
    %v135 = vpop.f32.mrb[0].mxu0
    %v136 = vadd.f32 0.0, %v135
    %v137 = vpop.f32.mrb[0].mxu0
    %138 = vdwg.mxu0
    %139 = vst [vmem:[#allocation5] sm:$0xff] %v131
    %140 = vst [vmem:[#allocation5 + $0x8] sm:$0xff] %v136
    %v141 = vld [vmem:[%s1] sm:$0xff]
    %v142 = vld [vmem:[%s1 + $0x8] sm:$0xff]
    %143 = vmax.xlane.f32.xlu0 %v131
    %v144 = vpop.xlane.xlu0 %143
    %145 = vmax.xlane.f32.xlu0 %v136
    %v146 = vpop.xlane.xlu0 %145
    %v147 = vsub.f32 %v131, %v144
    %v148 = vsub.f32 %v136, %v146
    %v149 = vmul.f32 %v147, 1.442695
    %v150 = vpow.pop %v149
    %v151 = vmul.f32 %v148, 1.442695
    %v152 = vpow.pop %v151
    %153 = vadd.xlane.f32.xlu0 %v150
    %v154 = vpop.xlane.xlu0 %153
    %155 = vadd.xlane.f32.xlu0 %v152
    %v156 = vpop.xlane.xlu0 %155
    %v157 = vlog2.pop %v154
    %v158 = vmul.f32 %v157, 0.6931472
    %v159 = vlog2.pop %v156
    %v160 = vmul.f32 %v159, 0.6931472
    %v161 = vadd.f32 %v144, %v158
    %v162 = vadd.f32 %v146, %v160
    %163 = vset.pattern.permute.xlu0 0
    %164 = vperm.xlu0 %163, %v141
    %v165 = vpop.permute.xlu0 %164
    %166 = vset.pattern.permute.xlu0 0
    %167 = vperm.xlu0 %166, %v142
    %v168 = vpop.permute.xlu0 %167
    %vm169 = vcmp.eq.s32.totalorder %v35, %v165
    %vm170 = vcmp.eq.s32.totalorder %v35, %v168
    %v171 = vsel %vm169, %v131, 0.0
    %v172 = vsel %vm170, %v136, 0.0
    %173 = vadd.xlane.f32.xlu0 %v171
    %v174 = vpop.xlane.xlu0 %173
    %175 = vadd.xlane.f32.xlu0 %v172
    %v176 = vpop.xlane.xlu0 %175
    %vm177 = vcmp.ge.s32.totalorder %v141, 0
    %vm178 = vcmp.ge.s32.totalorder %v142, 0
    %v179 = vsub.f32 %v161, %v174
    %v180 = vsub.f32 %v162, %v176
    %v181 = vsel %vm177, %v179, 0.0
    %v182 = vsel %vm178, %v180, 0.0
    %vm183 = vcmask 7168
    %v184 = vsel %vm183, %v181, 0.0
    %v185 = vsel %vm183, %v182, 0.0
    %v186 = vadd.f32 %v184, %v185
    %187 = vadd.xlane.f32.xlu0 %v186
    %v188 = vpop.xlane.xlu0 %187
    %v189 = vrot.slane %v188, 4
    %v190 = vadd.f32 %v188, %v189
    %v191 = vrot.slane %v190, 2
    %v192 = vadd.f32 %v190, %v191
    %v193 = vrot.slane %v192, 1
    %v194 = vadd.f32 %v192, %v193
    %s195 = vtos %v194
    %v196 = vlaneseq
    %v197 = vshrl.u32 %v196, 7
    %vm198 = vcmp.eq.s32.totalorder %v197, 0
    %vm199 = vcmp.eq.s32.totalorder %v35, 0
    %vm200 = vmand %vm198, %vm199
    %v201 = vstv %s195
    %v202 = vsel %vm200, %v201, 0.0
    %203 = vst [vmem:[#allocation6] sm:$0xff] %v202
    // Predicated region
    $region18: #{tpu_custom_call.1} parent=1 // pred_check
      _
    $region19: #{tpu_custom_call.1} parent=1 // pred_check_branch
      %205 = sbr.rel (0) target = $region21
    $region20: #{tpu_custom_call.1} parent=1 // pred_region
      %s207 = ssub.s32 256, 256
      %208 = vsyncadd [#allocation4], %s207
      %s209 = sshll.u32 [#allocation5], 4
      %s210 = int_to_ptr.vmem [resolvable:$true] %s209
      %215 = dma.vmem_to_hbm [thread:$0]  %s210, 256, %s3, [#allocation4], 128, 128, 8
    $region21: #{tpu_custom_call.1} parent=1 // pred_fallthru
      _
    // Predicated region
    $region22: #{tpu_custom_call.1} parent=1 // pred_check
      _
    $region23: #{tpu_custom_call.1} parent=1 // pred_check_branch
      %217 = sbr.rel (0) target = $region25
    $region24: #{tpu_custom_call.1} parent=1 // pred_region
      %s219 = ssub.s32 128, 128
      %220 = vsyncadd [#allocation7], %s219
      %s222 = sshll.u32 [#allocation6], 4
      %s223 = int_to_ptr.vmem [resolvable:$true] %s222
      %225 = dma.vmem_to_hbm [thread:$0]  %s223, 128, %s4, [#allocation7]
    $region25: #{tpu_custom_call.1} parent=1 // pred_fallthru
      _
    // Predicated region
    $region26: #{tpu_custom_call.1} parent=1 // pred_check
      _
    $region27: #{tpu_custom_call.1} parent=1 // pred_check_branch
      %227 = sbr.rel (0) target = $region29
    $region28: #{tpu_custom_call.1} parent=1 // pred_region
      %228 = dma.done [#allocation4], 256
    $region29: #{tpu_custom_call.1} parent=1 // pred_fallthru
      _
    // Predicated region
    $region30: #{tpu_custom_call.1} parent=1 // pred_check
      _
    $region31: #{tpu_custom_call.1} parent=1 // pred_check_branch
      %230 = sbr.rel (0) target = $region33
    $region32: #{tpu_custom_call.1} parent=1 // pred_region
      %231 = dma.done [#allocation7], 128
    $region33: #{tpu_custom_call.1} parent=1 // pred_fallthru
      _
    %232 = vsyncpa [#allocation3], 1
    %233 = vsyncpa [#allocation4], 1
    %234 = vsyncpa [#allocation7], 1

// kernel: tpu_custom_call.1
$region0: #{tpu_custom_call.1}
  #allocation0 [shape = 'u32[]', space=smem, size = 0x4, offset = 0x4, fixed_abs, tag = 'smem constant byte address 0x4 - core index']
  #allocation1 [shape = 'u32[144,128]{1,0:T(1,128)}', space=vmem, size = 0x12000, scoped, tag = 'internal scratch']
  %s0 = inlined_call_operand.vmem [shape: s32[16,1], index: 0, kind: input, shape index: {}]
  %s1 = inlined_call_operand.vmem [shape: s32[16,1], index: 1, kind: input, shape index: {}]
  %s2 = inlined_call_operand.hbm [shape: f32[128,128], index: 2, kind: input, shape index: {}]
  %s3 = inlined_call_operand.hbm [shape: f32[16,128], index: 3, kind: output, shape index: {0}]
  %s4 = inlined_call_operand.hbm [shape: f32[1,8,128], index: 4, kind: output, shape index: {1}]
  %5 = xla_tuple %s3, %s4
  %s6 = sld [smem:[#allocation0]]
  $region34: #{tpu_custom_call.1} parent=0
    _
  %s8 = ssub.s32 1, %s6
  %s9 = scalar_select 0, %s8, %s6
  $region1: #{tpu_custom_call.1} parent=0
    #allocation2 [shape = 'u8[65536]{0}', space=vmem, size = 0x10000, scoped, tag = 'input window, operand 2, single buffered']
    #allocation3 [shape = 's32[1]{0}', space=sflag, size = 0x4, scoped, tag = 'scoped memory for tpu_custom_call.1']
    #allocation4 [shape = 's32[1]{0}', space=sflag, size = 0x4, scoped, tag = 'scoped memory for tpu_custom_call.1']
    #allocation5 [shape = 'u8[8192]{0}', space=vmem, size = 0x2000, scoped, tag = 'output window, operand 0, single buffered']
    #allocation6 [shape = 'u8[4096]{0}', space=vmem, size = 0x1000, scoped, tag = 'output window, operand 1, single buffered']
    #allocation7 [shape = 's32[1]{0}', space=sflag, size = 0x4, scoped, tag = 'scoped memory for tpu_custom_call.1']
    %10 = vsyncpa [#allocation3], 0
    %11 = vsyncpa [#allocation4], 0
    %12 = vsyncpa [#allocation7], 0
    // Predicated region
    $region2: #{tpu_custom_call.1} parent=1 // pred_check
      _
    $region3: #{tpu_custom_call.1} parent=1 // pred_check_branch
      %14 = sbr.rel (0) target = $region5
    $region4: #{tpu_custom_call.1} parent=1 // pred_region
      _
    $region5: #{tpu_custom_call.1} parent=1 // pred_fallthru
      _
    // Predicated region
    $region6: #{tpu_custom_call.1} parent=1 // pred_check
      _
    $region7: #{tpu_custom_call.1} parent=1 // pred_check_branch
      %16 = sbr.rel (0) target = $region9
    $region8: #{tpu_custom_call.1} parent=1 // pred_region
      _
    $region9: #{tpu_custom_call.1} parent=1 // pred_fallthru
      _
    // Predicated region
    $region10: #{tpu_custom_call.1} parent=1 // pred_check
      _
    $region11: #{tpu_custom_call.1} parent=1 // pred_check_branch
      %18 = sbr.rel (0) target = $region13
    $region12: #{tpu_custom_call.1} parent=1 // pred_region
      %s20 = ssub.s32 2048, 2048
      %21 = vsyncadd [#allocation3], %s20
      %s22 = sshll.u32 [#allocation2], 4
      %s23 = int_to_ptr.vmem [resolvable:$true] %s22
      %28 = dma.hbm_to_vmem [thread:$0]  %s2, 2048, %s23, [#allocation3], 128, 128, 8
    $region13: #{tpu_custom_call.1} parent=1 // pred_fallthru
      _
    // Predicated region
    $region14: #{tpu_custom_call.1} parent=1 // pred_check
      _
    $region15: #{tpu_custom_call.1} parent=1 // pred_check_branch
      %30 = sbr.rel (0) target = $region17
    $region16: #{tpu_custom_call.1} parent=1 // pred_region
      %31 = dma.done [#allocation3], 2048
    $region17: #{tpu_custom_call.1} parent=1 // pred_fallthru
      _
    %v32 = vld [vmem:[%s0] sm:$0xff]
    %v33 = vld [vmem:[%s0 + $0x8] sm:$0xff]
    %v34 = vlaneseq
    %v35 = vand.u32 %v34, 127
    %36 = vset.pattern.permute.xlu0 0
    %37 = vperm.xlu0 %36, %v32
    %v38 = vpop.permute.xlu0 %37
    %39 = vset.pattern.permute.xlu0 0
    %40 = vperm.xlu0 %39, %v33
    %v41 = vpop.permute.xlu0 %40
    %vm42 = vcmp.eq.s32.totalorder %v35, %v38
    %vm43 = vcmp.eq.s32.totalorder %v35, %v41
    %v44 = vsel %vm42, 1, 0
    %v45 = vsel %vm43, 1, 0
    %v46 = vcvt.s32.f32 %v44
    %v47 = vcvt.s32.f32 %v45
    %v48 = vld [vmem:[#allocation2] sm:$0xff]
    %v49 = vld [vmem:[#allocation2 + $0x8] sm:$0xff]
    %v50 = vld [vmem:[#allocation2 + $0x10] sm:$0xff]
    %v51 = vld [vmem:[#allocation2 + $0x18] sm:$0xff]
    %v52 = vld [vmem:[#allocation2 + $0x20] sm:$0xff]
    %v53 = vld [vmem:[#allocation2 + $0x28] sm:$0xff]
    %v54 = vld [vmem:[#allocation2 + $0x30] sm:$0xff]
    %v55 = vld [vmem:[#allocation2 + $0x38] sm:$0xff]
    %v56 = vld [vmem:[#allocation2 + $0x40] sm:$0xff]
    %v57 = vld [vmem:[#allocation2 + $0x48] sm:$0xff]
    %v58 = vld [vmem:[#allocation2 + $0x50] sm:$0xff]
    %v59 = vld [vmem:[#allocation2 + $0x58] sm:$0xff]
    %v60 = vld [vmem:[#allocation2 + $0x60] sm:$0xff]
    %v61 = vld [vmem:[#allocation2 + $0x68] sm:$0xff]
    %v62 = vld [vmem:[#allocation2 + $0x70] sm:$0xff]
    %v63 = vld [vmem:[#allocation2 + $0x78] sm:$0xff]
    %64 = vmatprep.subr.mxu0 0.0
    %65 = vmatpush1.msra.mxu0 %v48
    %66 = vmatprep.subr.mxu0 0.0
    %67 = vmatpush1.msra.mxu0 %v49
    %68 = vmatprep.subr.mxu0 0.0
    %69 = vmatpush1.msra.mxu0 %v50
    %70 = vmatprep.subr.mxu0 0.0
    %71 = vmatpush1.msra.mxu0 %v51
    %72 = vmatprep.subr.mxu0 0.0
    %73 = vmatpush1.msra.mxu0 %v52
    %74 = vmatprep.subr.mxu0 0.0
    %75 = vmatpush1.msra.mxu0 %v53
    %76 = vmatprep.subr.mxu0 0.0
    %77 = vmatpush1.msra.mxu0 %v54
    %78 = vmatprep.subr.mxu0 0.0
    %79 = vmatpush1.msra.mxu0 %v55
    %80 = vmatprep.subr.mxu0 0.0
    %81 = vmatpush1.msra.mxu0 %v56
    %82 = vmatprep.subr.mxu0 0.0
    %83 = vmatpush1.msra.mxu0 %v57
    %84 = vmatprep.subr.mxu0 0.0
    %85 = vmatpush1.msra.mxu0 %v58
    %86 = vmatprep.subr.mxu0 0.0
    %87 = vmatpush1.msra.mxu0 %v59
    %88 = vmatprep.subr.mxu0 0.0
    %89 = vmatpush1.msra.mxu0 %v60
    %90 = vmatprep.subr.mxu0 0.0
    %91 = vmatpush1.msra.mxu0 %v61
    %92 = vmatprep.subr.mxu0 0.0
    %93 = vmatpush1.msra.mxu0 %v62
    %94 = vmatprep.subr.mxu0 0.0
    %95 = vmatpush1.msra.mxu0 %v63
    %96 = vmatprep.subr.mxu0 0.0
    %97 = vmatpush1.msra.mxu0 0.0
    %98 = vmatprep.subr.mxu0 0.0
    %99 = vmatpush1.msra.mxu0 0.0
    %100 = vmatprep.subr.mxu0 0.0
    %101 = vmatpush1.msra.mxu0 0.0
    %102 = vmatprep.subr.mxu0 0.0
    %103 = vmatpush1.msra.mxu0 0.0
    %104 = vmatprep.subr.mxu0 0.0
    %105 = vmatpush1.msra.mxu0 0.0
    %106 = vmatprep.subr.mxu0 0.0
    %107 = vmatpush1.msra.mxu0 0.0
    %108 = vmatprep.subr.mxu0 0.0
    %109 = vmatpush1.msra.mxu0 0.0
    %110 = vmatprep.subr.mxu0 0.0
    %111 = vmatpush1.msra.mxu0 0.0
    %112 = vmatprep.subr.mxu0 0.0
    %113 = vmatpush1.msra.mxu0 0.0
    %114 = vmatprep.subr.mxu0 0.0
    %115 = vmatpush1.msra.mxu0 0.0
    %116 = vmatprep.subr.mxu0 0.0
    %117 = vmatpush1.msra.mxu0 0.0
    %118 = vmatprep.subr.mxu0 0.0
    %119 = vmatpush1.msra.mxu0 0.0
    %120 = vmatprep.subr.mxu0 0.0
    %121 = vmatpush1.msra.mxu0 0.0
    %122 = vmatprep.subr.mxu0 0.0
    %123 = vmatpush1.msra.mxu0 0.0
    %124 = vmatprep.subr.mxu0 0.0
    %125 = vmatpush1.msra.mxu0 0.0
    %126 = vmatprep.subr.mxu0 0.0
    %127 = vmatpush1.msra.mxu0 0.0
    %128 = vmatprep.mubr.f32.mxu0 0.0
    %129 = vmatmul.mubr.f32.gmra.mrb[0].mxu0 %v46
    %v130 = vpop.f32.mrb[0].mxu0
    %v131 = vadd.f32 0.0, %v130
    %v132 = vpop.f32.mrb[0].mxu0
    %133 = vmatprep.mubr.f32.mxu0 0.0
    %134 = vmatmul.mubr.f32.gmra.mrb[0].mxu0 %v47
    %v135 = vpop.f32.mrb[0].mxu0
    %v136 = vadd.f32 0.0, %v135
    %v137 = vpop.f32.mrb[0].mxu0
    %138 = vdwg.mxu0
    %139 = vst [vmem:[#allocation5] sm:$0xff] %v131
    %140 = vst [vmem:[#allocation5 + $0x8] sm:$0xff] %v136
    %v141 = vld [vmem:[%s1] sm:$0xff]
    %v142 = vld [vmem:[%s1 + $0x8] sm:$0xff]
    %143 = vmax.xlane.f32.xlu0 %v131
    %v144 = vpop.xlane.xlu0 %143
    %145 = vmax.xlane.f32.xlu0 %v136
    %v146 = vpop.xlane.xlu0 %145
    %v147 = vsub.f32 %v131, %v144
    %v148 = vsub.f32 %v136, %v146
    %v149 = vmul.f32 %v147, 1.442695
    %v150 = vpow.pop %v149
    %v151 = vmul.f32 %v148, 1.442695
    %v152 = vpow.pop %v151
    %153 = vadd.xlane.f32.xlu0 %v150
    %v154 = vpop.xlane.xlu0 %153
    %155 = vadd.xlane.f32.xlu0 %v152
    %v156 = vpop.xlane.xlu0 %155
    %v157 = vlog2.pop %v154
    %v158 = vmul.f32 %v157, 0.6931472
    %v159 = vlog2.pop %v156
    %v160 = vmul.f32 %v159, 0.6931472
    %v161 = vadd.f32 %v144, %v158
    %v162 = vadd.f32 %v146, %v160
    %163 = vset.pattern.permute.xlu0 0
    %164 = vperm.xlu0 %163, %v141
    %v165 = vpop.permute.xlu0 %164
    %166 = vset.pattern.permute.xlu0 0
    %167 = vperm.xlu0 %166, %v142
    %v168 = vpop.permute.xlu0 %167
    %vm169 = vcmp.eq.s32.totalorder %v35, %v165
    %vm170 = vcmp.eq.s32.totalorder %v35, %v168
    %v171 = vsel %vm169, %v131, 0.0
    %v172 = vsel %vm170, %v136, 0.0
    %173 = vadd.xlane.f32.xlu0 %v171
    %v174 = vpop.xlane.xlu0 %173
    %175 = vadd.xlane.f32.xlu0 %v172
    %v176 = vpop.xlane.xlu0 %175
    %vm177 = vcmp.ge.s32.totalorder %v141, 0
    %vm178 = vcmp.ge.s32.totalorder %v142, 0
    %v179 = vsub.f32 %v161, %v174
    %v180 = vsub.f32 %v162, %v176
    %v181 = vsel %vm177, %v179, 0.0
    %v182 = vsel %vm178, %v180, 0.0
    %vm183 = vcmask 7168
    %v184 = vsel %vm183, %v181, 0.0
    %v185 = vsel %vm183, %v182, 0.0
    %v186 = vadd.f32 %v184, %v185
    %187 = vadd.xlane.f32.xlu0 %v186
    %v188 = vpop.xlane.xlu0 %187
    %v189 = vrot.slane %v188, 4
    %v190 = vadd.f32 %v188, %v189
    %v191 = vrot.slane %v190, 2
    %v192 = vadd.f32 %v190, %v191
    %v193 = vrot.slane %v192, 1
    %v194 = vadd.f32 %v192, %v193
    %s195 = vtos %v194
    %v196 = vlaneseq
    %v197 = vshrl.u32 %v196, 7
    %vm198 = vcmp.eq.s32.totalorder %v197, 0
    %vm199 = vcmp.eq.s32.totalorder %v35, 0
    %vm200 = vmand %vm198, %vm199
    %v201 = vstv %s195
    %v202 = vsel %vm200, %v201, 0.0
    %203 = vst [vmem:[#allocation6] sm:$0xff] %v202
    // Predicated region
    $region18: #{tpu_custom_call.1} parent=1 // pred_check
      _
    $region19: #{tpu_custom_call.1} parent=1 // pred_check_branch
      %205 = sbr.rel (0) target = $region21
    $region20: #{tpu_custom_call.1} parent=1 // pred_region
      %s207 = ssub.s32 256, 256
      %208 = vsyncadd [#allocation4], %s207
      %s209 = sshll.u32 [#allocation5], 4
      %s210 = int_to_ptr.vmem [resolvable:$true] %s209
      %215 = dma.vmem_to_hbm [thread:$0]  %s210, 256, %s3, [#allocation4], 128, 128, 8
    $region21: #{tpu_custom_call.1} parent=1 // pred_fallthru
      _
    // Predicated region
    $region22: #{tpu_custom_call.1} parent=1 // pred_check
      _
    $region23: #{tpu_custom_call.1} parent=1 // pred_check_branch
      %217 = sbr.rel (0) target = $region25
    $region24: #{tpu_custom_call.1} parent=1 // pred_region
      %s219 = ssub.s32 128, 128
      %220 = vsyncadd [#allocation7], %s219
      %s222 = sshll.u32 [#allocation6], 4
      %s223 = int_to_ptr.vmem [resolvable:$true] %s222
      %225 = dma.vmem_to_hbm [thread:$0]  %s223, 128, %s4, [#allocation7]
    $region25: #{tpu_custom_call.1} parent=1 // pred_fallthru
      _
    // Predicated region
    $region26: #{tpu_custom_call.1} parent=1 // pred_check
      _
    $region27: #{tpu_custom_call.1} parent=1 // pred_check_branch
      %227 = sbr.rel (0) target = $region29
    $region28: #{tpu_custom_call.1} parent=1 // pred_region
      %228 = dma.done [#allocation4], 256
    $region29: #{tpu_custom_call.1} parent=1 // pred_fallthru
      _
    // Predicated region
    $region30: #{tpu_custom_call.1} parent=1 // pred_check
      _
    $region31: #{tpu_custom_call.1} parent=1 // pred_check_branch
      %230 = sbr.rel (0) target = $region33
    $region32: #{tpu_custom_call.1} parent=1 // pred_region
      %231 = dma.done [#allocation7], 128
    $region33: #{tpu_custom_call.1} parent=1 // pred_fallthru
      _
    %232 = vsyncpa [#allocation3], 1
    %233 = vsyncpa [#allocation4], 1
    %234 = vsyncpa [#allocation7], 1

</llo_original>
